<compile_context>
chip_gen: v7x
topology: tpu7x:2x2x1
jax: 0.10.0
libtpu: 0.0.40
codegen_flags: <defaults>
</compile_context>

<pallas_src>
import functools

import jax
import jax.numpy as jnp
from jax.experimental import pallas as pl
from jax.experimental.pallas import tpu as pltpu


def _lsa_kernel(u_ref, x2_ref, mask_ref, out_ref, *, is_output):
    # u_ref:    (TB, D)     float32, u = x1 @ W
    # x2_ref:   (TB, L2, D) native dtype
    # mask_ref: (TB, L2)    float32, 1.0 where masked
    # out_ref:  (TB, L2) if is_output else (TB, D)
    x2 = x2_ref[...].astype(jnp.float32)                    # (TB, L2, D)
    u = u_ref[...]                                          # (TB, D)
    mask = mask_ref[...]                                    # (TB, L2)

    # scores[b, l] = sum_d u[b, d] * x2[b, l, d]   (VPU multiply + lane reduce;
    # no degenerate 1-row MXU matmuls, no (L2, H) intermediate)
    scores = jnp.sum(x2 * u[:, None, :], axis=-1)           # (TB, L2) f32
    # masked_fill_(mask, -1e30)
    scores = jnp.where(mask != 0.0, jnp.float32(-1e30), scores)

    m = jnp.max(scores, axis=-1, keepdims=True)
    e = jnp.exp(scores - m)
    s = jnp.sum(e, axis=-1, keepdims=True)

    if is_output:
        # log_softmax over the sequence axis
        out_ref[...] = (scores - m - jnp.log(s)).astype(out_ref.dtype)
    else:
        # softmax, then attention-weighted sum of x2 -> (TB, D)
        alpha = e / s                                       # (TB, L2)
        att = jnp.sum(alpha[:, :, None] * x2, axis=1)       # (TB, D)
        out_ref[...] = att.astype(out_ref.dtype)


def _pick_batch_tile(B, bytes_per_batch_row):
    """Batch tile: full B when small, else a sublane-dense multiple of 8,
    capped so the double-buffered x2 tile stays well inside scoped VMEM
    (conservative for v5e's 16 MiB default and v7x's 64 MiB part)."""
    if B <= 8:
        return B
    budget = 4 * 1024 * 1024                                # ~4 MiB per x2 buffer
    cap = max(8, (budget // max(bytes_per_batch_row, 1)) // 8 * 8)
    return int(min(64, cap))


def linear_self_attention(x1, x2, x2_mask, weight, *, is_output=False):
    """Pallas implementation of LinearSelfAttention.forward (eval mode).

    x1:      (B, H) or None
    x2:      (B, L2, D)
    x2_mask: (B, L2) bool, True = masked
    weight:  (H, D)  nn.Linear weight (no bias)
    returns: (B, L2) log-probs if is_output else (B, D) attended vector
    """
    B, L2, D = x2.shape
    H = weight.shape[0]
    assert weight.shape == (H, D)

    # u = x1 @ W -> (B, D): one well-shaped MXU matmul handled by XLA; the
    # per-token projection (L2*D*H FLOPs per batch) of the original disappears.
    if x1 is None:
        # PyTorch path requires hidden_size == 1; scores == linear(x2) squeezed,
        # which equals u . x2 with u = broadcast(W).
        assert H == 1, "x1 is None requires hidden_size == 1"
        u = jnp.broadcast_to(weight.astype(jnp.float32), (B, D))
    else:
        assert x1.shape == (B, H)
        u = jnp.dot(x1, weight, preferred_element_type=jnp.float32)    # (B, D)

    maskf = x2_mask.astype(jnp.float32)                     # (B, L2)
    out_dim = L2 if is_output else D
    out_dtype = x2.dtype

    TB = _pick_batch_tile(B, L2 * D * x2.dtype.itemsize)
    Bp = pl.cdiv(B, TB) * TB
    if Bp != B:                                             # pad batch to a TB multiple
        pad = Bp - B
        u = jnp.pad(u, ((0, pad), (0, 0)))
        x2 = jnp.pad(x2, ((0, pad), (0, 0), (0, 0)))
        maskf = jnp.pad(maskf, ((0, pad), (0, 0)))

    kernel = functools.partial(_lsa_kernel, is_output=is_output)
    out = pl.pallas_call(
        kernel,
        out_shape=jax.ShapeDtypeStruct((Bp, out_dim), out_dtype),
        grid=(Bp // TB,),
        in_specs=[
            pl.BlockSpec((TB, D), lambda i: (i, 0)),          # u      (f32)
            pl.BlockSpec((TB, L2, D), lambda i: (i, 0, 0)),   # x2     (native dtype)
            pl.BlockSpec((TB, L2), lambda i: (i, 0)),         # mask   (f32)
        ],
        out_specs=pl.BlockSpec((TB, out_dim), lambda i: (i, 0)),
        compiler_params=pltpu.CompilerParams(
            dimension_semantics=("parallel",)),               # 2-TC sharding on v7x
    )(u, x2, maskf)
    return out[:B]


def _reference(x1, x2, x2_mask, weight, *, is_output=False):
    """Pure-JAX reference matching the PyTorch forward (eval mode)."""
    x2_key = jnp.einsum("bld,hd->blh", x2, weight)           # (B, L2, H)
    if x1 is None:
        scores = x2_key[..., 0]                              # (B, L2), H == 1
    else:
        scores = jnp.einsum("bh,blh->bl", x1, x2_key)        # (B, L2)
    scores = jnp.where(x2_mask, jnp.float32(-1e30), scores)
    if is_output:
        return jax.nn.log_softmax(scores, axis=-1)
    alpha = jax.nn.softmax(scores, axis=-1)
    return jnp.einsum("bl,bld->bd", alpha, x2)


if __name__ == "__main__":
    B, L2, D, H = 2, 8, 32, 32
    key = jax.random.PRNGKey(0)
    k1, k2, k3, k4 = jax.random.split(key, 4)

    x1 = jax.random.normal(k1, (B, H), dtype=jnp.float32)
    x2 = jax.random.normal(k2, (B, L2, D), dtype=jnp.float32)
    # Deterministic mask: mask out the tail of each sequence (lengths 8 and 5).
    lengths = jnp.array([8, 5], dtype=jnp.int32)
    x2_mask = jnp.arange(L2)[None, :] >= lengths[:, None]    # (B, L2) bool
    # Deterministic nn.Linear(input_size=D, hidden_size=H, bias=False) weight.
    weight = 0.1 * jax.random.normal(k3, (H, D), dtype=jnp.float32)

    # Case 1: x1 given, is_output=False -> attended vector (B, D)
    out_attn = linear_self_attention(x1, x2, x2_mask, weight, is_output=False)
    jax.block_until_ready(out_attn)
    ref_attn = _reference(x1, x2, x2_mask, weight, is_output=False)
    assert out_attn.shape == (B, D)
    assert jnp.allclose(out_attn, ref_attn, rtol=1e-5, atol=2e-5)

    # Case 2: x1 given, is_output=True -> log-softmax scores (B, L2)
    out_log = linear_self_attention(x1, x2, x2_mask, weight, is_output=True)
    jax.block_until_ready(out_log)
    ref_log = _reference(x1, x2, x2_mask, weight, is_output=True)
    assert out_log.shape == (B, L2)
    assert jnp.allclose(out_log, ref_log, rtol=1e-5, atol=2e-5)

    # Case 3: x1 is None (requires hidden_size == 1), is_output=False
    weight1 = 0.1 * jax.random.normal(k4, (1, D), dtype=jnp.float32)
    out_none = linear_self_attention(None, x2, x2_mask, weight1, is_output=False)
    jax.block_until_ready(out_none)
    ref_none = _reference(None, x2, x2_mask, weight1, is_output=False)
    assert out_none.shape == (B, D)
    assert jnp.allclose(out_none, ref_none, rtol=1e-5, atol=2e-5)

    print("KERNEL_OK")
</pallas_src>

<mosaic_0001>
module attributes {stable_mosaic.version = 11 : i64} {
  func.func @_lsa_kernel(%arg0: i32, %arg1: memref<2x32xf32, #tpu.memory_space<vmem>>, %arg2: memref<2x8x32xf32, #tpu.memory_space<vmem>>, %arg3: memref<2x8xf32, #tpu.memory_space<vmem>>, %arg4: memref<2x32xf32, #tpu.memory_space<vmem>>) attributes {dimension_semantics = [#tpu.dimension_semantics<parallel>], iteration_bounds = array<i64: 1>, scalar_prefetch = 0 : i64, scratch_operands = 0 : i64, tpu.core_type = #tpu.core_type<tc>, window_params = [{transform_indices = @transform_0, window_bounds = array<i64: 2, 32>}, {transform_indices = @transform_1, window_bounds = array<i64: 2, 8, 32>}, {transform_indices = @transform_2, window_bounds = array<i64: 2, 8>}, {transform_indices = @transform_3, window_bounds = array<i64: 2, 32>}]} {
    %c0 = arith.constant 0 : index
    %c0_0 = arith.constant 0 : index
    %c0_1 = arith.constant 0 : index
    %0 = vector.load %arg2[%c0, %c0_0, %c0_1] : memref<2x8x32xf32, #tpu.memory_space<vmem>>, vector<2x8x32xf32>
    %c0_2 = arith.constant 0 : index
    %c0_3 = arith.constant 0 : index
    %1 = vector.load %arg1[%c0_2, %c0_3] : memref<2x32xf32, #tpu.memory_space<vmem>>, vector<2x32xf32>
    %c0_4 = arith.constant 0 : index
    %c0_5 = arith.constant 0 : index
    %2 = vector.load %arg3[%c0_4, %c0_5] : memref<2x8xf32, #tpu.memory_space<vmem>>, vector<2x8xf32>
    %3 = vector.shape_cast %1 : vector<2x32xf32> to vector<2x1x32xf32>
    %4 = vector.broadcast %3 : vector<2x1x32xf32> to vector<2x8x32xf32>
    %5 = arith.mulf %0, %4 : vector<2x8x32xf32>
    %cst = arith.constant dense<0.000000e+00> : vector<2x8xf32>
    %6 = vector.multi_reduction <add>, %5, %cst [2] : vector<2x8x32xf32> to vector<2x8xf32>
    %cst_6 = arith.constant 0.000000e+00 : f32
    %7 = vector.broadcast %cst_6 : f32 to vector<2x8xf32>
    %8 = arith.cmpf one, %2, %7 : vector<2x8xf32>
    %cst_7 = arith.constant -1.000000e+30 : f32
    %9 = vector.broadcast %cst_7 : f32 to vector<2x8xf32>
    %10 = arith.select %8, %9, %6 : vector<2x8xi1>, vector<2x8xf32>
    %cst_8 = arith.constant dense<0xFF800000> : vector<2xf32>
    %11 = vector.multi_reduction <maximumf>, %10, %cst_8 [1] : vector<2x8xf32> to vector<2xf32>
    %12 = vector.shape_cast %11 : vector<2xf32> to vector<2x1xf32>
    %13 = vector.broadcast %12 : vector<2x1xf32> to vector<2x8xf32>
    %14 = arith.subf %10, %13 : vector<2x8xf32>
    %15 = math.exp %14 : vector<2x8xf32>
    %cst_9 = arith.constant dense<0.000000e+00> : vector<2xf32>
    %16 = vector.multi_reduction <add>, %15, %cst_9 [1] : vector<2x8xf32> to vector<2xf32>
    %17 = vector.shape_cast %16 : vector<2xf32> to vector<2x1xf32>
    %18 = vector.broadcast %17 : vector<2x1xf32> to vector<2x8xf32>
    %19 = arith.divf %15, %18 : vector<2x8xf32>
    %20 = vector.shape_cast %19 : vector<2x8xf32> to vector<2x8x1xf32>
    %21 = vector.broadcast %20 : vector<2x8x1xf32> to vector<2x8x32xf32>
    %22 = arith.mulf %21, %0 : vector<2x8x32xf32>
    %cst_10 = arith.constant dense<0.000000e+00> : vector<2x32xf32>
    %23 = vector.multi_reduction <add>, %22, %cst_10 [1] : vector<2x8x32xf32> to vector<2x32xf32>
    %c0_11 = arith.constant 0 : index
    %c0_12 = arith.constant 0 : index
    %24 = vector.load %arg4[%c0_11, %c0_12] : memref<2x32xf32, #tpu.memory_space<vmem>>, vector<2x32xf32>
    tpu.vector_store %arg4[%c0_11, %c0_12], %23 {strides = array<i32>} : memref<2x32xf32, #tpu.memory_space<vmem>>, vector<2x32xf32>,
    return
  }
  func.func @transform_0(%arg0: i32) -> (i32, i32) {
    %c0_i32 = arith.constant 0 : i32
    %c0_i32_0 = arith.constant 0 : i32
    return %arg0, %c0_i32 : i32, i32
  }
  func.func @transform_1(%arg0: i32) -> (i32, i32, i32) {
    %c0_i32 = arith.constant 0 : i32
    %c0_i32_0 = arith.constant 0 : i32
    %c0_i32_1 = arith.constant 0 : i32
    return %arg0, %c0_i32, %c0_i32_0 : i32, i32, i32
  }
  func.func @transform_2(%arg0: i32) -> (i32, i32) {
    %c0_i32 = arith.constant 0 : i32
    %c0_i32_0 = arith.constant 0 : i32
    return %arg0, %c0_i32 : i32, i32
  }
  func.func @transform_3(%arg0: i32) -> (i32, i32) {
    %c0_i32 = arith.constant 0 : i32
    %c0_i32_0 = arith.constant 0 : i32
    return %arg0, %c0_i32 : i32, i32
  }
}

</mosaic_0001>

<llo_original>
// kernel: tpu_custom_call.1
$region0: #{tpu_custom_call.1}
  #allocation0 [shape = 'u32[]', space=smem, size = 0x4, offset = 0x4, fixed_abs, tag = 'smem constant byte address 0x4 - core index']
  #allocation1 [shape = 'u32[144,128]{1,0:T(1,128)}', space=vmem, size = 0x12000, scoped, tag = 'internal scratch']
  %s0 = inlined_call_operand.hbm [shape: f32[2,32], index: 0, kind: input, shape index: {}]
  %s1 = inlined_call_operand.hbm [shape: f32[2,8,32], index: 1, kind: input, shape index: {}]
  %s2 = inlined_call_operand.vmem [shape: f32[2,8], index: 2, kind: input, shape index: {}]
  %s3 = inlined_call_operand.hbm [shape: f32[2,32], index: 3, kind: output, shape index: {}]
  %s4 = sld [smem:[#allocation0]]
  $region30: #{tpu_custom_call.1} parent=0
    _
  %s6 = ssub.s32 1, %s4
  %s7 = scalar_select 0, %s6, %s4
  $region1: #{tpu_custom_call.1} parent=0
    #allocation2 [shape = 'u8[1024]{0}', space=vmem, size = 0x400, scoped, tag = 'input window, operand 0, single buffered']
    #allocation3 [shape = 's32[1]{0}', space=sflag, size = 0x4, scoped, tag = 'scoped memory for tpu_custom_call.1']
    #allocation4 [shape = 's32[1]{0}', space=sflag, size = 0x4, scoped, tag = 'scoped memory for tpu_custom_call.1']
    #allocation5 [shape = 'u8[8192]{0}', space=vmem, size = 0x2000, scoped, tag = 'input window, operand 1, single buffered']
    #allocation6 [shape = 's32[1]{0}', space=sflag, size = 0x4, scoped, tag = 'scoped memory for tpu_custom_call.1']
    #allocation7 [shape = 'u8[1024]{0}', space=vmem, size = 0x400, scoped, tag = 'output window, operand 0, single buffered']
    %8 = vsyncpa [#allocation3], 0
    %9 = vsyncpa [#allocation6], 0
    %10 = vsyncpa [#allocation4], 0
    // Predicated region
    $region2: #{tpu_custom_call.1} parent=1 // pred_check
      _
    $region3: #{tpu_custom_call.1} parent=1 // pred_check_branch
      %12 = sbr.rel (0) target = $region5
    $region4: #{tpu_custom_call.1} parent=1 // pred_region
      %s14 = ssub.s32 32, 32
      %15 = vsyncadd [#allocation3], %s14
      %s17 = sshll.u32 [#allocation2], 4
      %s18 = int_to_ptr.vmem [resolvable:$true] %s17
      %20 = dma.hbm_to_vmem [thread:$0]  %s0, 32, %s18, [#allocation3]
    $region5: #{tpu_custom_call.1} parent=1 // pred_fallthru
      _
    // Predicated region
    $region6: #{tpu_custom_call.1} parent=1 // pred_check
      _
    $region7: #{tpu_custom_call.1} parent=1 // pred_check_branch
      %22 = sbr.rel (0) target = $region9
    $region8: #{tpu_custom_call.1} parent=1 // pred_region
      %s24 = ssub.s32 256, 256
      %25 = vsyncadd [#allocation6], %s24
      %s26 = sshll.u32 [#allocation5], 4
      %s27 = int_to_ptr.vmem [resolvable:$true] %s26
      %32 = dma.hbm_to_vmem [thread:$0]  %s1, 256, %s27, [#allocation6], 128, 128, 8
    $region9: #{tpu_custom_call.1} parent=1 // pred_fallthru
      _
    // Predicated region
    $region10: #{tpu_custom_call.1} parent=1 // pred_check
      _
    $region11: #{tpu_custom_call.1} parent=1 // pred_check_branch
      %34 = sbr.rel (0) target = $region13
    $region12: #{tpu_custom_call.1} parent=1 // pred_region
      _
    $region13: #{tpu_custom_call.1} parent=1 // pred_fallthru
      _
    // Predicated region
    $region14: #{tpu_custom_call.1} parent=1 // pred_check
      _
    $region15: #{tpu_custom_call.1} parent=1 // pred_check_branch
      %36 = sbr.rel (0) target = $region17
    $region16: #{tpu_custom_call.1} parent=1 // pred_region
      %37 = dma.done [#allocation3], 32
    $region17: #{tpu_custom_call.1} parent=1 // pred_fallthru
      _
    // Predicated region
    $region18: #{tpu_custom_call.1} parent=1 // pred_check
      _
    $region19: #{tpu_custom_call.1} parent=1 // pred_check_branch
      %39 = sbr.rel (0) target = $region21
    $region20: #{tpu_custom_call.1} parent=1 // pred_region
      %40 = dma.done [#allocation6], 256
    $region21: #{tpu_custom_call.1} parent=1 // pred_fallthru
      _
    %v41 = vld [vmem:[#allocation5] sm:$0xff]
    %v42 = vld [vmem:[#allocation5 + $0x8] sm:$0xff]
    %v43 = vld [vmem:[#allocation2] sm:$0x3]
    %v44 = vld [vmem:[%s2] sm:$0x3]
    %v47 = vunpack.c.l.s4 1966171168
    %v48 = vunpack.c.0.s8 %v47
    %v49 = vlaneseq
    %v50 = vshrl.u32 %v49, 7
    %v51 = vsub.s32 %v48, %v50
    %v52 = vrot.slane %v43, %v51
    %v53 = vcombine.high %v52, %v52
    %v55 = vunpack.c.l.s4 1966171168
    %v56 = vunpack.c.0.s8 %v55
    %v57 = vlaneseq
    %v58 = vshrl.u32 %v57, 7
    %v59 = vsub.s32 %v56, %v58
    %v60 = vrot.slane %v52, %v59
    %v62 = vunpack.c.l.s4 1966171168
    %v63 = vunpack.c.0.s8 %v62
    %v64 = vlaneseq
    %v65 = vshrl.u32 %v64, 7
    %v66 = vsub.s32 %v63, %v65
    %v67 = vrot.slane %v53, %v66
    %v68 = vlaneseq
    %v69 = vshrl.u32 %v68, 7
    %v70 = vsub.s32 0, %v69
    %v71 = vrot.slane %v60, %v70
    %v72 = vlaneseq
    %v73 = vshrl.u32 %v72, 7
    %v74 = vsub.s32 0, %v73
    %v75 = vrot.slane %v67, %v74
    %v78 = vmul.f32 %v41, %v71
    %v79 = vmul.f32 %v42, %v75
    %vm80 = vcmask 261120
    %v81 = vsel %vm80, %v78, 0.0
    %82 = vadd.xlane.f32.xlu0 %v81
    %v83 = vpop.xlane.xlu0 %82
    %v84 = vsel %vm80, %v79, 0.0
    %85 = vadd.xlane.f32.xlu0 %v84
    %v86 = vpop.xlane.xlu0 %85
    %vm87 = vcmp.ne.f32.partialorder %v44, 0.0
    %v90 = vlaneseq
    %v91 = vand.u32 %v90, 127
    %v92 = vlaneseq
    %v93 = vshrl.u32 %v92, 7
    %v94 = vsub.s32 %v91, %v93
    %v95 = vrot.slane %v83, %v94
    %v96 = vlaneseq
    %v97 = vshrl.u32 %v96, 7
    %v98 = vsub.s32 %v91, %v97
    %v99 = vrot.slane %v86, %v98
    %vm100 = vcmask 1041409
    %v101 = vsel %vm100, %v99, %v95
    %v103 = vsel %vm87, -1e+30, %v101
    %vm104 = vcmask 58368
    %v105 = vsel %vm104, %v103, -inf
    %106 = vmax.xlane.f32.xlu0 %v105
    %v107 = vpop.xlane.xlu0 %106
    %v108 = vsub.f32 %v103, %v107
    %v109 = vmul.f32 %v108, 1.442695
    %v110 = vpow.pop %v109
    %v111 = vsel %vm104, %v110, 0.0
    %112 = vadd.xlane.f32.xlu0 %v111
    %v113 = vpop.xlane.xlu0 %112
    %v114 = vrcp.pop %v113
    %v115 = vmul.f32 %v110, %v114
    %v116 = vlaneseq
    %v117 = vshrl.u32 %v116, 7
    %v118 = vsub.s32 0, %v117
    %v119 = vrot.slane %v115, %v118
    %121 = vbcast.lane.b32.xlu0 %v119, 256
    %v122 = vpop.permute.xlu0 %121
    %v123 = vlaneseq
    %v124 = vshrl.u32 %v123, 7
    %v125 = vsub.s32 1, %v124
    %v126 = vrot.slane %v115, %v125
    %128 = vbcast.lane.b32.xlu0 %v126, 256
    %v129 = vpop.permute.xlu0 %128
    %v130 = vmul.f32 %v122, %v41
    %v131 = vmul.f32 %v129, %v42
    %v132 = vsel %vm80, %v130, 0.0
    %v133 = vrot.slane %v132, 4
    %v134 = vadd.f32 %v132, %v133
    %v135 = vrot.slane %v134, 2
    %v136 = vadd.f32 %v134, %v135
    %v137 = vrot.slane %v136, 1
    %v138 = vadd.f32 %v136, %v137
    %v139 = vsel %vm80, %v131, 0.0
    %v140 = vrot.slane %v139, 4
    %v141 = vadd.f32 %v139, %v140
    %v142 = vrot.slane %v141, 2
    %v143 = vadd.f32 %v141, %v142
    %v144 = vrot.slane %v143, 1
    %v145 = vadd.f32 %v143, %v144
    %v148 = vsel %vm100, %v145, %v138
    %vm150 = vcmask 254976
    %151 = vst.msk [vmem:[#allocation7] sm:$0x3] %vm150, %v148
    // Predicated region
    $region22: #{tpu_custom_call.1} parent=1 // pred_check
      _
    $region23: #{tpu_custom_call.1} parent=1 // pred_check_branch
      %153 = sbr.rel (0) target = $region25
    $region24: #{tpu_custom_call.1} parent=1 // pred_region
      %s155 = ssub.s32 32, 32
      %156 = vsyncadd [#allocation4], %s155
      %s158 = sshll.u32 [#allocation7], 4
      %s159 = int_to_ptr.vmem [resolvable:$true] %s158
      %161 = dma.vmem_to_hbm [thread:$0]  %s159, 32, %s3, [#allocation4]
    $region25: #{tpu_custom_call.1} parent=1 // pred_fallthru
      _
    // Predicated region
    $region26: #{tpu_custom_call.1} parent=1 // pred_check
      _
    $region27: #{tpu_custom_call.1} parent=1 // pred_check_branch
      %163 = sbr.rel (0) target = $region29
    $region28: #{tpu_custom_call.1} parent=1 // pred_region
      %164 = dma.done [#allocation4], 32
    $region29: #{tpu_custom_call.1} parent=1 // pred_fallthru
      _
    %165 = vsyncpa [#allocation3], 1
    %166 = vsyncpa [#allocation6], 1
    %167 = vsyncpa [#allocation4], 1

</llo_original>
